<compile_context>
chip_gen: v7x
topology: tpu7x:2x2x1
jax: 0.10.0
libtpu: 0.0.40
codegen_flags: <defaults>
</compile_context>

<pallas_src>
import functools

import jax
import jax.numpy as jnp
from jax import lax
from jax.experimental import pallas as pl
from jax.experimental.pallas import tpu as pltpu

BN_EPS = 1e-5

# x[B, C_in] (contract dim 1)  .  w[C_out, C_in] (contract dim 1)  ->  [B, C_out]
_CONTRACT_ON_CIN = (((1,), (1,)), ((), ()))


def _hidden_kernel(x_ref, w_ref, pgb_ref, bits_ref, o_ref, *,
                   keep_threshold, keep_scale):
    # Linear: z = x @ W^T + b   (MXU, fp32 accumulation; no wrapper transpose)
    z = lax.dot_general(x_ref[...], w_ref[...], _CONTRACT_ON_CIN,
                        preferred_element_type=jnp.float32)
    z = z + pgb_ref[0:1, :]                       # bias row

    # BatchNorm1d (training mode: batch mean, biased batch variance)
    mean = jnp.mean(z, axis=0, keepdims=True)
    var = jnp.mean((z - mean) * (z - mean), axis=0, keepdims=True)
    y = (z - mean) * lax.rsqrt(var + BN_EPS)
    y = y * pgb_ref[1:2, :] + pgb_ref[2:3, :]     # gamma / beta rows

    # ReLU
    y = jnp.maximum(y, 0.0)

    # Dropout: integer threshold compare on raw uint32 bits (inverted scaling)
    keep = bits_ref[...] >= jnp.uint32(keep_threshold)
    y = jnp.where(keep, y * jnp.float32(keep_scale), 0.0)

    o_ref[...] = y.astype(o_ref.dtype)


def _output_kernel(x_ref, w_ref, b_ref, o_ref):
    # Linear only: z = x @ W^T + b
    z = lax.dot_general(x_ref[...], w_ref[...], _CONTRACT_ON_CIN,
                        preferred_element_type=jnp.float32)
    o_ref[...] = (z + b_ref[...]).astype(o_ref.dtype)


def _full_spec(shape):
    # Single grid step, full-array blocks (BN reduction needs the whole batch).
    return pl.BlockSpec(shape, lambda i: (0,) * len(shape))


def layer_forward(x, w, b, gamma=None, beta=None, *, p=0.5, output=False,
                  dropout_key=None):
    """x: [B, C_in]; w: [C_out, C_in] (PyTorch layout); b/gamma/beta: [C_out]."""
    B, C_in = x.shape
    C_out = w.shape[0]

    x = x.astype(jnp.float32)
    w = w.astype(jnp.float32)
    compiler_params = pltpu.CompilerParams(dimension_semantics=("arbitrary",))

    if output:
        # Trimmed kernel: linear only — no gamma/beta/dropout inputs at all.
        b2 = b.reshape(1, C_out).astype(jnp.float32)
        return pl.pallas_call(
            _output_kernel,
            out_shape=jax.ShapeDtypeStruct((B, C_out), jnp.float32),
            grid=(1,),
            in_specs=[
                _full_spec((B, C_in)),      # x
                _full_spec((C_out, C_in)),  # w (native PyTorch layout)
                _full_spec((1, C_out)),     # bias
            ],
            out_specs=_full_spec((B, C_out)),
            compiler_params=compiler_params,
        )(x, w, b2)

    # Hidden-layer path: fc -> bn -> relu -> dropout
    pgb = jnp.stack([b, gamma, beta]).astype(jnp.float32)   # [3, C_out], one DMA

    if dropout_key is None:
        dropout_key = jax.random.PRNGKey(0)
    # TODO(synk): dropout mask stream differs from torch.rand's RNG.
    bits = jax.random.bits(dropout_key, (B, C_out), dtype=jnp.uint32)

    keep_threshold = min(int(p * 4294967296.0), 4294967295)  # P(bits >= t) = 1-p
    keep_scale = 1.0 / (1.0 - p)
    kernel = functools.partial(_hidden_kernel,
                               keep_threshold=keep_threshold,
                               keep_scale=keep_scale)

    return pl.pallas_call(
        kernel,
        out_shape=jax.ShapeDtypeStruct((B, C_out), jnp.float32),
        grid=(1,),
        in_specs=[
            _full_spec((B, C_in)),      # x
            _full_spec((C_out, C_in)),  # w (native PyTorch layout)
            _full_spec((3, C_out)),     # packed bias / gamma / beta
            _full_spec((B, C_out)),     # dropout random bits
        ],
        out_specs=_full_spec((B, C_out)),
        compiler_params=compiler_params,
    )(x, w, pgb, bits)


if __name__ == "__main__":
    # Small shapes consistent with the module: batch=8, in_channels=32, out_channels=16
    B, C_in, C_out = 8, 32, 16
    key = jax.random.PRNGKey(0)
    kx, kw, kb, kd = jax.random.split(key, 4)

    x = jax.random.normal(kx, (B, C_in), dtype=jnp.float32)

    # Deterministic parameter init (mirrors nn.Linear's uniform fan-in init).
    bound = 1.0 / (C_in ** 0.5)
    w = jax.random.uniform(kw, (C_out, C_in), minval=-bound, maxval=bound,
                           dtype=jnp.float32)
    b = jax.random.uniform(kb, (C_out,), minval=-bound, maxval=bound,
                           dtype=jnp.float32)
    gamma = jnp.ones((C_out,), dtype=jnp.float32)   # BatchNorm1d weight
    beta = jnp.zeros((C_out,), dtype=jnp.float32)   # BatchNorm1d bias

    # Hidden layer path: dropout(relu(bn(fc(x))))
    y = layer_forward(x, w, b, gamma, beta, p=0.5, output=False, dropout_key=kd)
    jax.block_until_ready(y)

    # Output layer path: fc(x) only
    y_out = layer_forward(x, w, b, output=True)
    jax.block_until_ready(y_out)

    assert y.shape == (B, C_out) and y_out.shape == (B, C_out)
    assert bool(jnp.all(jnp.isfinite(y))) and bool(jnp.all(jnp.isfinite(y_out)))
    print("KERNEL_OK")
</pallas_src>

<mosaic_0001>
module attributes {stable_mosaic.version = 11 : i64} {
  func.func @_hidden_kernel(%arg0: i32, %arg1: memref<8x32xf32, #tpu.memory_space<vmem>>, %arg2: memref<16x32xf32, #tpu.memory_space<vmem>>, %arg3: memref<3x16xf32, #tpu.memory_space<vmem>>, %arg4: memref<8x16xi32, #tpu.memory_space<vmem>>, %arg5: memref<8x16xf32, #tpu.memory_space<vmem>>) attributes {dimension_semantics = [#tpu.dimension_semantics<arbitrary>], iteration_bounds = array<i64: 1>, scalar_prefetch = 0 : i64, scratch_operands = 0 : i64, tpu.core_type = #tpu.core_type<tc>, window_params = [{pipeline_mode = #tpu.pipeline_mode<synchronous>, transform_indices = @transform_0, window_bounds = array<i64: 8, 32>}, {pipeline_mode = #tpu.pipeline_mode<synchronous>, transform_indices = @transform_1, window_bounds = array<i64: 16, 32>}, {pipeline_mode = #tpu.pipeline_mode<synchronous>, transform_indices = @transform_2, window_bounds = array<i64: 3, 16>}, {pipeline_mode = #tpu.pipeline_mode<synchronous>, transform_indices = @transform_3, window_bounds = array<i64: 8, 16>}, {pipeline_mode = #tpu.pipeline_mode<synchronous>, transform_indices = @transform_4, window_bounds = array<i64: 8, 16>}]} {
    %c0 = arith.constant 0 : index
    %c0_0 = arith.constant 0 : index
    %0 = vector.load %arg1[%c0, %c0_0] : memref<8x32xf32, #tpu.memory_space<vmem>>, vector<8x32xf32>
    %c0_1 = arith.constant 0 : index
    %c0_2 = arith.constant 0 : index
    %1 = vector.load %arg2[%c0_1, %c0_2] : memref<16x32xf32, #tpu.memory_space<vmem>>, vector<16x32xf32>
    %cst = arith.constant dense<0.000000e+00> : vector<8x16xf32>
    %2 = tpu.matmul %0, %1, %cst {dimension_numbers = #tpu.dot_dimension_numbers<[1], [1], [0], [0], [0, 0, 1, 0], [], []>} : vector<8x32xf32>, vector<16x32xf32>, vector<8x16xf32> -> vector<8x16xf32>
    %c0_3 = arith.constant 0 : index
    %c0_4 = arith.constant 0 : index
    %3 = vector.load %arg3[%c0_3, %c0_4] : memref<3x16xf32, #tpu.memory_space<vmem>>, vector<1x16xf32>
    %4 = vector.broadcast %3 : vector<1x16xf32> to vector<8x16xf32>
    %5 = arith.addf %2, %4 : vector<8x16xf32>
    %cst_5 = arith.constant dense<0.000000e+00> : vector<16xf32>
    %6 = vector.multi_reduction <add>, %5, %cst_5 [0] : vector<8x16xf32> to vector<16xf32>
    %7 = vector.shape_cast %6 : vector<16xf32> to vector<1x16xf32>
    %cst_6 = arith.constant 8.000000e+00 : f32
    %8 = vector.broadcast %cst_6 : f32 to vector<1x16xf32>
    %9 = arith.divf %7, %8 : vector<1x16xf32>
    %10 = vector.broadcast %9 : vector<1x16xf32> to vector<8x16xf32>
    %11 = arith.subf %5, %10 : vector<8x16xf32>
    %12 = vector.broadcast %9 : vector<1x16xf32> to vector<8x16xf32>
    %13 = arith.subf %5, %12 : vector<8x16xf32>
    %14 = arith.mulf %11, %13 : vector<8x16xf32>
    %cst_7 = arith.constant dense<0.000000e+00> : vector<16xf32>
    %15 = vector.multi_reduction <add>, %14, %cst_7 [0] : vector<8x16xf32> to vector<16xf32>
    %16 = vector.shape_cast %15 : vector<16xf32> to vector<1x16xf32>
    %cst_8 = arith.constant 8.000000e+00 : f32
    %17 = vector.broadcast %cst_8 : f32 to vector<1x16xf32>
    %18 = arith.divf %16, %17 : vector<1x16xf32>
    %19 = vector.broadcast %9 : vector<1x16xf32> to vector<8x16xf32>
    %20 = arith.subf %5, %19 : vector<8x16xf32>
    %cst_9 = arith.constant 9.99999974E-6 : f32
    %21 = vector.broadcast %cst_9 : f32 to vector<1x16xf32>
    %22 = arith.addf %18, %21 : vector<1x16xf32>
    %23 = math.rsqrt %22 : vector<1x16xf32>
    %24 = vector.broadcast %23 : vector<1x16xf32> to vector<8x16xf32>
    %25 = arith.mulf %20, %24 : vector<8x16xf32>
    %c1 = arith.constant 1 : index
    %c0_10 = arith.constant 0 : index
    %26 = vector.load %arg3[%c1, %c0_10] : memref<3x16xf32, #tpu.memory_space<vmem>>, vector<1x16xf32>
    %27 = vector.broadcast %26 : vector<1x16xf32> to vector<8x16xf32>
    %28 = arith.mulf %25, %27 : vector<8x16xf32>
    %c2 = arith.constant 2 : index
    %c0_11 = arith.constant 0 : index
    %29 = vector.load %arg3[%c2, %c0_11] : memref<3x16xf32, #tpu.memory_space<vmem>>, vector<1x16xf32>
    %30 = vector.broadcast %29 : vector<1x16xf32> to vector<8x16xf32>
    %31 = arith.addf %28, %30 : vector<8x16xf32>
    %cst_12 = arith.constant 0.000000e+00 : f32
    %32 = vector.broadcast %cst_12 : f32 to vector<8x16xf32>
    %33 = arith.maximumf %31, %32 : vector<8x16xf32>
    %c0_13 = arith.constant 0 : index
    %c0_14 = arith.constant 0 : index
    %34 = vector.load %arg4[%c0_13, %c0_14] : memref<8x16xi32, #tpu.memory_space<vmem>>, vector<8x16xi32>
    %c-2147483648_i32 = arith.constant -2147483648 : i32
    %35 = vector.broadcast %c-2147483648_i32 : i32 to vector<8x16xi32>
    %36 = arith.cmpi uge, %34, %35 : vector<8x16xi32>
    %cst_15 = arith.constant 2.000000e+00 : f32
    %37 = vector.broadcast %cst_15 : f32 to vector<8x16xf32>
    %38 = arith.mulf %33, %37 : vector<8x16xf32>
    %cst_16 = arith.constant 0.000000e+00 : f32
    %39 = vector.broadcast %cst_16 : f32 to vector<8x16xf32>
    %40 = arith.select %36, %38, %39 : vector<8x16xi1>, vector<8x16xf32>
    %c0_17 = arith.constant 0 : index
    %c0_18 = arith.constant 0 : index
    %41 = vector.load %arg5[%c0_17, %c0_18] : memref<8x16xf32, #tpu.memory_space<vmem>>, vector<8x16xf32>
    tpu.vector_store %arg5[%c0_17, %c0_18], %40 {strides = array<i32>} : memref<8x16xf32, #tpu.memory_space<vmem>>, vector<8x16xf32>,
    return
  }
  func.func @transform_0(%arg0: i32) -> (i32, i32) {
    %c0_i32 = arith.constant 0 : i32
    %c0_i32_0 = arith.constant 0 : i32
    %c0_i32_1 = arith.constant 0 : i32
    return %c0_i32, %c0_i32_0 : i32, i32
  }
  func.func @transform_1(%arg0: i32) -> (i32, i32) {
    %c0_i32 = arith.constant 0 : i32
    %c0_i32_0 = arith.constant 0 : i32
    %c0_i32_1 = arith.constant 0 : i32
    return %c0_i32, %c0_i32_0 : i32, i32
  }
  func.func @transform_2(%arg0: i32) -> (i32, i32) {
    %c0_i32 = arith.constant 0 : i32
    %c0_i32_0 = arith.constant 0 : i32
    %c0_i32_1 = arith.constant 0 : i32
    return %c0_i32, %c0_i32_0 : i32, i32
  }
  func.func @transform_3(%arg0: i32) -> (i32, i32) {
    %c0_i32 = arith.constant 0 : i32
    %c0_i32_0 = arith.constant 0 : i32
    %c0_i32_1 = arith.constant 0 : i32
    return %c0_i32, %c0_i32_0 : i32, i32
  }
  func.func @transform_4(%arg0: i32) -> (i32, i32) {
    %c0_i32 = arith.constant 0 : i32
    %c0_i32_0 = arith.constant 0 : i32
    %c0_i32_1 = arith.constant 0 : i32
    return %c0_i32, %c0_i32_0 : i32, i32
  }
}

</mosaic_0001>

<llo_original>
// kernel: tpu_custom_call.1
$region0: #{tpu_custom_call.1}
  #allocation0 [shape = 'u32[]', space=smem, size = 0x4, offset = 0x4, fixed_abs, tag = 'smem constant byte address 0x4 - core index']
  #allocation1 [shape = 'u32[144,128]{1,0:T(1,128)}', space=vmem, size = 0x12000, scoped, tag = 'internal scratch']
  %s0 = inlined_call_operand.hbm [shape: f32[8,32], index: 0, kind: input, shape index: {}]
  %s1 = inlined_call_operand.hbm [shape: f32[16,32], index: 1, kind: input, shape index: {}]
  %s2 = inlined_call_operand.hbm [shape: f32[3,16], index: 2, kind: input, shape index: {}]
  %s3 = inlined_call_operand.vmem [shape: u32[8,16], index: 3, kind: input, shape index: {}]
  %s4 = inlined_call_operand.hbm [shape: f32[8,16], index: 4, kind: output, shape index: {}]
  %s5 = sld [smem:[#allocation0]]
  $region38: #{tpu_custom_call.1} parent=0
    _
  %s7 = ssub.s32 1, %s5
  %s8 = scalar_select 0, %s7, %s5
  $region1: #{tpu_custom_call.1} parent=0
    #allocation2 [shape = 'u8[4096]{0}', space=vmem, size = 0x1000, scoped, tag = 'input window, operand 0, single buffered']
    #allocation3 [shape = 's32[1]{0}', space=sflag, size = 0x4, scoped, tag = 'scoped memory for tpu_custom_call.1']
    #allocation4 [shape = 's32[1]{0}', space=sflag, size = 0x4, scoped, tag = 'scoped memory for tpu_custom_call.1']
    #allocation5 [shape = 'u8[8192]{0}', space=vmem, size = 0x2000, scoped, tag = 'input window, operand 1, single buffered']
    #allocation6 [shape = 's32[1]{0}', space=sflag, size = 0x4, scoped, tag = 'scoped memory for tpu_custom_call.1']
    #allocation7 [shape = 'u8[2048]{0}', space=vmem, size = 0x800, scoped, tag = 'input window, operand 2, single buffered']
    #allocation8 [shape = 'u8[4096]{0}', space=vmem, size = 0x1000, scoped, tag = 'output window, operand 0, single buffered']
    %9 = vsyncpa [#allocation3], 0
    %10 = vsyncpa [#allocation6], 0
    %11 = vsyncpa [#allocation4], 0
    // Predicated region
    $region2: #{tpu_custom_call.1} parent=1 // pred_check
      _
    $region3: #{tpu_custom_call.1} parent=1 // pred_check_branch
      %13 = sbr.rel (0) target = $region5
    $region4: #{tpu_custom_call.1} parent=1 // pred_region
      %s15 = ssub.s32 128, 128
      %16 = vsyncadd [#allocation3], %s15
      %s18 = sshll.u32 [#allocation2], 4
      %s19 = int_to_ptr.vmem [resolvable:$true] %s18
      %21 = dma.hbm_to_vmem [thread:$0]  %s0, 128, %s19, [#allocation3]
    $region5: #{tpu_custom_call.1} parent=1 // pred_fallthru
      _
    // Predicated region
    $region6: #{tpu_custom_call.1} parent=1 // pred_check
      _
    $region7: #{tpu_custom_call.1} parent=1 // pred_check_branch
      %23 = sbr.rel (0) target = $region9
    $region8: #{tpu_custom_call.1} parent=1 // pred_region
      %s25 = ssub.s32 256, 256
      %26 = vsyncadd [#allocation6], %s25
      %s27 = sshll.u32 [#allocation5], 4
      %s28 = int_to_ptr.vmem [resolvable:$true] %s27
      %33 = dma.hbm_to_vmem [thread:$0]  %s1, 256, %s28, [#allocation6], 128, 128, 8
    $region9: #{tpu_custom_call.1} parent=1 // pred_fallthru
      _
    // Predicated region
    $region10: #{tpu_custom_call.1} parent=1 // pred_check
      _
    $region11: #{tpu_custom_call.1} parent=1 // pred_check_branch
      %35 = sbr.rel (0) target = $region13
    $region12: #{tpu_custom_call.1} parent=1 // pred_region
      %s37 = ssub.s32 64, 64
      %38 = vsyncadd [#allocation6], %s37
      %s40 = sshll.u32 [#allocation7], 4
      %s41 = int_to_ptr.vmem [resolvable:$true] %s40
      %43 = dma.hbm_to_vmem [thread:$0]  %s2, 64, %s41, [#allocation6]
    $region13: #{tpu_custom_call.1} parent=1 // pred_fallthru
      _
    // Predicated region
    $region14: #{tpu_custom_call.1} parent=1 // pred_check
      _
    $region15: #{tpu_custom_call.1} parent=1 // pred_check_branch
      %45 = sbr.rel (0) target = $region17
    $region16: #{tpu_custom_call.1} parent=1 // pred_region
      _
    $region17: #{tpu_custom_call.1} parent=1 // pred_fallthru
      _
    // Predicated region
    $region18: #{tpu_custom_call.1} parent=1 // pred_check
      _
    $region19: #{tpu_custom_call.1} parent=1 // pred_check_branch
      %47 = sbr.rel (0) target = $region21
    $region20: #{tpu_custom_call.1} parent=1 // pred_region
      %48 = dma.done [#allocation3], 128
    $region21: #{tpu_custom_call.1} parent=1 // pred_fallthru
      _
    // Predicated region
    $region22: #{tpu_custom_call.1} parent=1 // pred_check
      _
    $region23: #{tpu_custom_call.1} parent=1 // pred_check_branch
      %50 = sbr.rel (0) target = $region25
    $region24: #{tpu_custom_call.1} parent=1 // pred_region
      %51 = dma.done [#allocation6], 256
    $region25: #{tpu_custom_call.1} parent=1 // pred_fallthru
      _
    // Predicated region
    $region26: #{tpu_custom_call.1} parent=1 // pred_check
      _
    $region27: #{tpu_custom_call.1} parent=1 // pred_check_branch
      %53 = sbr.rel (0) target = $region29
    $region28: #{tpu_custom_call.1} parent=1 // pred_region
      %54 = dma.done [#allocation6], 64
    $region29: #{tpu_custom_call.1} parent=1 // pred_fallthru
      _
    %v55 = vld [vmem:[#allocation2] sm:$0xff]
    %v56 = vld [vmem:[#allocation5] sm:$0xff]
    %v57 = vld [vmem:[#allocation5 + $0x8] sm:$0xff]
    %v58 = vld [vmem:[#allocation7] sm:$0x1]
    %v59 = vlaneseq
    %v60 = vshrl.u32 %v59, 7
    %v61 = vsub.s32 0, %v60
    %v62 = vrot.slane %v58, %v61
    %vm63 = vcmask 261120
    %v65 = vsel %vm63, %v55, 0
    %v68 = vsel %vm63, %v56, 0
    %v71 = vsel %vm63, %v57, 0
    %73 = vmatprep.subr.mxu0 0.0
    %74 = vmatpush1.xpose.msra.mxu0 %v68
    %75 = vmatprep.subr.mxu0 0.0
    %76 = vmatpush1.xpose.msra.mxu0 %v71
    %77 = vmatprep.subr.mxu0 0.0
    %78 = vmatpush1.xpose.msra.mxu0 0.0
    %79 = vmatprep.subr.mxu0 0.0
    %80 = vmatpush1.xpose.msra.mxu0 0.0
    %81 = vmatprep.subr.mxu0 0.0
    %82 = vmatpush1.xpose.msra.mxu0 0.0
    %83 = vmatprep.subr.mxu0 0.0
    %84 = vmatpush1.xpose.msra.mxu0 0.0
    %85 = vmatprep.subr.mxu0 0.0
    %86 = vmatpush1.xpose.msra.mxu0 0.0
    %87 = vmatprep.subr.mxu0 0.0
    %88 = vmatpush1.xpose.msra.mxu0 0.0
    %89 = vmatprep.subr.mxu0 0.0
    %90 = vmatpush1.xpose.msra.mxu0 0.0
    %91 = vmatprep.subr.mxu0 0.0
    %92 = vmatpush1.xpose.msra.mxu0 0.0
    %93 = vmatprep.subr.mxu0 0.0
    %94 = vmatpush1.xpose.msra.mxu0 0.0
    %95 = vmatprep.subr.mxu0 0.0
    %96 = vmatpush1.xpose.msra.mxu0 0.0
    %97 = vmatprep.subr.mxu0 0.0
    %98 = vmatpush1.xpose.msra.mxu0 0.0
    %99 = vmatprep.subr.mxu0 0.0
    %100 = vmatpush1.xpose.msra.mxu0 0.0
    %101 = vmatprep.subr.mxu0 0.0
    %102 = vmatpush1.xpose.msra.mxu0 0.0
    %103 = vmatprep.subr.mxu0 0.0
    %104 = vmatpush1.xpose.msra.mxu0 0.0
    %105 = vmatprep.subr.mxu0 0.0
    %106 = vmatpush1.xpose.msra.mxu0 0.0
    %107 = vmatprep.subr.mxu0 0.0
    %108 = vmatpush1.xpose.msra.mxu0 0.0
    %109 = vmatprep.subr.mxu0 0.0
    %110 = vmatpush1.xpose.msra.mxu0 0.0
    %111 = vmatprep.subr.mxu0 0.0
    %112 = vmatpush1.xpose.msra.mxu0 0.0
    %113 = vmatprep.subr.mxu0 0.0
    %114 = vmatpush1.xpose.msra.mxu0 0.0
    %115 = vmatprep.subr.mxu0 0.0
    %116 = vmatpush1.xpose.msra.mxu0 0.0
    %117 = vmatprep.subr.mxu0 0.0
    %118 = vmatpush1.xpose.msra.mxu0 0.0
    %119 = vmatprep.subr.mxu0 0.0
    %120 = vmatpush1.xpose.msra.mxu0 0.0
    %121 = vmatprep.subr.mxu0 0.0
    %122 = vmatpush1.xpose.msra.mxu0 0.0
    %123 = vmatprep.subr.mxu0 0.0
    %124 = vmatpush1.xpose.msra.mxu0 0.0
    %125 = vmatprep.subr.mxu0 0.0
    %126 = vmatpush1.xpose.msra.mxu0 0.0
    %127 = vmatprep.subr.mxu0 0.0
    %128 = vmatpush1.xpose.msra.mxu0 0.0
    %129 = vmatprep.subr.mxu0 0.0
    %130 = vmatpush1.xpose.msra.mxu0 0.0
    %131 = vmatprep.subr.mxu0 0.0
    %132 = vmatpush1.xpose.msra.mxu0 0.0
    %133 = vmatprep.subr.mxu0 0.0
    %134 = vmatpush1.xpose.msra.mxu0 0.0
    %135 = vmatprep.subr.mxu0 0.0
    %136 = vmatpush1.xpose.msra.mxu0 0.0
    %137 = vmatprep.mubr.f32.mxu0 0.0
    %138 = vmatmul.mubr.f32.gmra.mrb[0].mxu0 %v65
    %v139 = vpop.f32.mrb[0].mxu0
    %v140 = vadd.f32 %v62, %v139
    %v141 = vpop.f32.mrb[0].mxu0
    %142 = vdwg.mxu0
    %vm143 = vcmask 130048
    %v144 = vsel %vm143, %v140, 0.0
    %v145 = vrot.slane %v144, 4
    %v146 = vadd.f32 %v144, %v145
    %v147 = vrot.slane %v146, 2
    %v148 = vadd.f32 %v146, %v147
    %v149 = vrot.slane %v148, 1
    %v150 = vadd.f32 %v148, %v149
    %v151 = vrcp.pop 8.0
    %v152 = vmul.f32 %v150, %v151
    %v153 = vsub.f32 %v140, %v152
    %v154 = vmul.f32 %v153, %v153
    %v155 = vsel %vm143, %v154, 0.0
    %v156 = vrot.slane %v155, 4
    %v157 = vadd.f32 %v155, %v156
    %v158 = vrot.slane %v157, 2
    %v159 = vadd.f32 %v157, %v158
    %v160 = vrot.slane %v159, 1
    %v161 = vadd.f32 %v159, %v160
    %v162 = vmul.f32 %v161, %v151
    %v163 = vadd.f32 %v162, 1e-05
    %v164 = vrsqrt.pop %v163
    %v165 = vmul.f32 %v153, %v164
    %v166 = vld [vmem:[#allocation7 + $0x1] sm:$0x1]
    %v167 = vlaneseq
    %v168 = vshrl.u32 %v167, 7
    %v169 = vsub.s32 0, %v168
    %v170 = vrot.slane %v166, %v169
    %v171 = vmul.f32 %v165, %v170
    %v172 = vld [vmem:[#allocation7 + $0x2] sm:$0x1]
    %v173 = vlaneseq
    %v174 = vshrl.u32 %v173, 7
    %v175 = vsub.s32 0, %v174
    %v176 = vrot.slane %v172, %v175
    %v177 = vadd.f32 %v171, %v176
    %v178 = vmax.f32 %v177, 0.0
    %v179 = vld [vmem:[%s3] sm:$0xff]
    %vm180 = vcmp.ge.u32.totalorder %v179, 2147483648
    %v181 = vmul.f32 %v178, 2.0
    %v182 = vsel %vm180, %v181, 0.0
    %183 = vst.msk [vmem:[#allocation8] sm:$0xff] %vm143, %v182
    // Predicated region
    $region30: #{tpu_custom_call.1} parent=1 // pred_check
      _
    $region31: #{tpu_custom_call.1} parent=1 // pred_check_branch
      %185 = sbr.rel (0) target = $region33
    $region32: #{tpu_custom_call.1} parent=1 // pred_region
      %s187 = ssub.s32 128, 128
      %188 = vsyncadd [#allocation4], %s187
      %s190 = sshll.u32 [#allocation8], 4
      %s191 = int_to_ptr.vmem [resolvable:$true] %s190
      %193 = dma.vmem_to_hbm [thread:$0]  %s191, 128, %s4, [#allocation4]
    $region33: #{tpu_custom_call.1} parent=1 // pred_fallthru
      _
    // Predicated region
    $region34: #{tpu_custom_call.1} parent=1 // pred_check
      _
    $region35: #{tpu_custom_call.1} parent=1 // pred_check_branch
      %195 = sbr.rel (0) target = $region37
    $region36: #{tpu_custom_call.1} parent=1 // pred_region
      %196 = dma.done [#allocation4], 128
    $region37: #{tpu_custom_call.1} parent=1 // pred_fallthru
      _
    %197 = vsyncpa [#allocation3], 1
    %198 = vsyncpa [#allocation6], 1
    %199 = vsyncpa [#allocation4], 1

</llo_original>
